<compile_context>
chip_gen: v7x
topology: tpu7x:2x2x1
jax: 0.10.0
libtpu: 0.0.40
codegen_flags: <defaults>
</compile_context>

<pallas_src>
import jax
import jax.numpy as jnp
from jax.experimental import pallas as pl
from jax.experimental.pallas import tpu as pltpu


NUM_BASIS = 50
NUM_BASIS_K = NUM_BASIS // 2            # 25 -> sin frequencies
NUM_BASIS_L = NUM_BASIS - NUM_BASIS_K   # 25 -> cos frequencies


def _smearing_kernel(angle_ref, fp_ref, out_ref):
    # angle_ref : (tile_n, 1)       f32
    # fp_ref    : (2, num_basis)    f32   row 0 = freq, row 1 = phase
    # out_ref   : (tile_n, num_basis) f32
    angle = angle_ref[...]                 # (tile_n, 1)
    freq = fp_ref[0:1, :]                  # (1, B)
    phase = fp_ref[1:2, :]                 # (1, B)
    # cos(x) == sin(x + pi/2): one transcendental per output element.
    out_ref[...] = jnp.sin(angle * freq + phase)


def _round_up(x, m):
    return (x + m - 1) // m * m


def asymmetric_sine_cosine_smearing(angle, freq_k, freq_l, *, tile_n=1024):
    """angle: any shape; flattened to (N,) like angle.view(-1, 1) in torch."""
    angle_flat = jnp.reshape(angle, (-1,)).astype(jnp.float32)
    n = angle_flat.shape[0]

    freq_k = jnp.reshape(freq_k, (-1,)).astype(jnp.float32)
    freq_l = jnp.reshape(freq_l, (-1,)).astype(jnp.float32)
    num_basis = freq_k.shape[0] + freq_l.shape[0]

    # Row 0: all frequencies; row 1: phase offsets (0 for sin lanes, pi/2 for
    # cos lanes).  Single small constant-index input block.
    freq_all = jnp.concatenate([freq_k, freq_l], axis=0)
    phase = jnp.concatenate(
        [jnp.zeros_like(freq_k), jnp.full_like(freq_l, jnp.float32(0.5 * jnp.pi))],
        axis=0,
    )
    fp = jnp.stack([freq_all, phase], axis=0)          # (2, num_basis)

    # Pick a big row tile, but never larger than the (8-aligned) problem size.
    tile = min(int(tile_n), _round_up(n, 8))
    n_pad = _round_up(n, tile)
    if n_pad != n:
        angle_flat = jnp.pad(angle_flat, (0, n_pad - n))
    angle_col = angle_flat.reshape(n_pad, 1)

    out = pl.pallas_call(
        _smearing_kernel,
        out_shape=jax.ShapeDtypeStruct((n_pad, num_basis), jnp.float32),
        grid_spec=pltpu.PrefetchScalarGridSpec(
            num_scalar_prefetch=0,
            grid=(n_pad // tile,),
            in_specs=[
                pl.BlockSpec((tile, 1), lambda i: (i, 0)),
                pl.BlockSpec((2, num_basis), lambda i: (0, 0)),
            ],
            out_specs=pl.BlockSpec((tile, num_basis), lambda i: (i, 0)),
        ),
        compiler_params=pltpu.CompilerParams(
            dimension_semantics=("parallel",)
        ),
    )(angle_col, fp)

    if n_pad != n:
        out = out[:n]
    return out


if __name__ == "__main__":
    # Deterministic "parameters" (registered buffers in the torch module):
    # freq_k = [1, ..., 25], freq_l = [1, ..., 25]
    freq_k = jnp.arange(1, NUM_BASIS_K + 1, dtype=jnp.float32)
    freq_l = jnp.arange(1, NUM_BASIS_L + 1, dtype=jnp.float32)

    def ref_fn(angle):
        a = jnp.reshape(angle, (-1,)).astype(jnp.float32)
        return jnp.concatenate(
            [
                jnp.sin(a[:, None] * freq_k[None, :]),
                jnp.cos(a[:, None] * freq_l[None, :]),
            ],
            axis=-1,
        )

    key = jax.random.PRNGKey(0)
    # Cover: single-tile exact (64), small non-multiple-of-8 (37),
    # multi-tile with remainder (2500 with tile_n=1024 -> grid=3).
    for n in (64, 37, 2500):
        key, sub = jax.random.split(key)
        angle = jax.random.uniform(sub, (n,), dtype=jnp.float32) * jnp.pi

        out = asymmetric_sine_cosine_smearing(angle, freq_k, freq_l)
        out = jax.block_until_ready(out)

        ref = ref_fn(angle)
        assert out.shape == (n, NUM_BASIS), out.shape
        # Slightly relaxed vs 1e-5: the sin(x + pi/2) fusion adds a ~half-ulp
        # rounding of the argument (|x| <= ~79), bounded well below 1e-5 but
        # stacked on top of the transcendental's own error.
        assert jnp.allclose(out, ref, atol=2e-5, rtol=2e-5)

    print("KERNEL_OK")
</pallas_src>

<mosaic_0001>
module attributes {stable_mosaic.version = 11 : i64} {
  func.func @_smearing_kernel(%arg0: i32, %arg1: memref<64x1xf32, #tpu.memory_space<vmem>>, %arg2: memref<2x50xf32, #tpu.memory_space<vmem>>, %arg3: memref<64x50xf32, #tpu.memory_space<vmem>>) attributes {dimension_semantics = [#tpu.dimension_semantics<parallel>], iteration_bounds = array<i64: 1>, scalar_prefetch = 0 : i64, scratch_operands = 0 : i64, tpu.core_type = #tpu.core_type<tc>, window_params = [{transform_indices = @transform_0, window_bounds = array<i64: 64, 1>}, {pipeline_mode = #tpu.pipeline_mode<synchronous>, transform_indices = @transform_1, window_bounds = array<i64: 2, 50>}, {transform_indices = @transform_2, window_bounds = array<i64: 64, 50>}]} {
    %c0 = arith.constant 0 : index
    %c0_0 = arith.constant 0 : index
    %0 = vector.load %arg1[%c0, %c0_0] : memref<64x1xf32, #tpu.memory_space<vmem>>, vector<64x1xf32>
    %c0_1 = arith.constant 0 : index
    %c0_2 = arith.constant 0 : index
    %1 = vector.load %arg2[%c0_1, %c0_2] : memref<2x50xf32, #tpu.memory_space<vmem>>, vector<1x50xf32>
    %c1 = arith.constant 1 : index
    %c0_3 = arith.constant 0 : index
    %2 = vector.load %arg2[%c1, %c0_3] : memref<2x50xf32, #tpu.memory_space<vmem>>, vector<1x50xf32>
    %3 = vector.broadcast %0 : vector<64x1xf32> to vector<64x50xf32>
    %4 = vector.broadcast %1 : vector<1x50xf32> to vector<64x50xf32>
    %5 = arith.mulf %3, %4 : vector<64x50xf32>
    %6 = vector.broadcast %2 : vector<1x50xf32> to vector<64x50xf32>
    %7 = arith.addf %5, %6 : vector<64x50xf32>
    %8 = math.sin %7 : vector<64x50xf32>
    %c0_4 = arith.constant 0 : index
    %c0_5 = arith.constant 0 : index
    %9 = vector.load %arg3[%c0_4, %c0_5] : memref<64x50xf32, #tpu.memory_space<vmem>>, vector<64x50xf32>
    tpu.vector_store %arg3[%c0_4, %c0_5], %8 {strides = array<i32>} : memref<64x50xf32, #tpu.memory_space<vmem>>, vector<64x50xf32>,
    return
  }
  func.func @transform_0(%arg0: i32) -> (i32, i32) {
    %c0_i32 = arith.constant 0 : i32
    %c0_i32_0 = arith.constant 0 : i32
    return %arg0, %c0_i32 : i32, i32
  }
  func.func @transform_1(%arg0: i32) -> (i32, i32) {
    %c0_i32 = arith.constant 0 : i32
    %c0_i32_0 = arith.constant 0 : i32
    %c0_i32_1 = arith.constant 0 : i32
    return %c0_i32, %c0_i32_0 : i32, i32
  }
  func.func @transform_2(%arg0: i32) -> (i32, i32) {
    %c0_i32 = arith.constant 0 : i32
    %c0_i32_0 = arith.constant 0 : i32
    return %arg0, %c0_i32 : i32, i32
  }
}

</mosaic_0001>

<llo_original>
// kernel: tpu_custom_call.1
$region0: #{tpu_custom_call.1}
  #allocation0 [shape = 'u32[]', space=smem, size = 0x4, offset = 0x4, fixed_abs, tag = 'smem constant byte address 0x4 - core index']
  #allocation1 [shape = 'u32[144,128]{1,0:T(1,128)}', space=vmem, size = 0x12000, scoped, tag = 'internal scratch']
  %s0 = inlined_call_operand.vmem [shape: f32[64,1], index: 0, kind: input, shape index: {}]
  %s1 = inlined_call_operand.vmem [shape: f32[2,50], index: 1, kind: input, shape index: {}]
  %s2 = inlined_call_operand.vmem [shape: f32[64,50], index: 2, kind: output, shape index: {}]
  %s3 = sld [smem:[#allocation0]]
  $region18: #{tpu_custom_call.1} parent=0
    _
  %s5 = ssub.s32 1, %s3
  %s6 = scalar_select 0, %s5, %s3
  // Predicated region
  $region2: #{tpu_custom_call.1} parent=0 // pred_check
    _
  $region3: #{tpu_custom_call.1} parent=0 // pred_check_branch
    %8 = sbr.rel (0) target = $region5
  $region4: #{tpu_custom_call.1} parent=0 // pred_region
    _
  $region5: #{tpu_custom_call.1} parent=0 // pred_fallthru
    _
  // Predicated region
  $region6: #{tpu_custom_call.1} parent=0 // pred_check
    _
  $region7: #{tpu_custom_call.1} parent=0 // pred_check_branch
    %10 = sbr.rel (0) target = $region9
  $region8: #{tpu_custom_call.1} parent=0 // pred_region
    _
  $region9: #{tpu_custom_call.1} parent=0 // pred_fallthru
    _
  %v11 = vld [vmem:[%s0] sm:$0xff]
  %v12 = vld [vmem:[%s0 + $0x8] sm:$0xff]
  %v13 = vld [vmem:[%s0 + $0x10] sm:$0xff]
  %v14 = vld [vmem:[%s0 + $0x18] sm:$0xff]
  %v15 = vld [vmem:[%s0 + $0x20] sm:$0xff]
  %v16 = vld [vmem:[%s0 + $0x28] sm:$0xff]
  %v17 = vld [vmem:[%s0 + $0x30] sm:$0xff]
  %v18 = vld [vmem:[%s0 + $0x38] sm:$0xff]
  %v19 = vld [vmem:[%s1] sm:$0x1]
  %v20 = vld [vmem:[%s1 + $0x1] sm:$0x1]
  %22 = vset.pattern.permute.xlu0 0
  %23 = vperm.xlu0 %22, %v11
  %v24 = vpop.permute.xlu0 %23
  %27 = vset.pattern.permute.xlu0 0
  %28 = vperm.xlu0 %27, %v12
  %v29 = vpop.permute.xlu0 %28
  %32 = vset.pattern.permute.xlu0 0
  %33 = vperm.xlu0 %32, %v13
  %v34 = vpop.permute.xlu0 %33
  %37 = vset.pattern.permute.xlu0 0
  %38 = vperm.xlu0 %37, %v14
  %v39 = vpop.permute.xlu0 %38
  %42 = vset.pattern.permute.xlu0 0
  %43 = vperm.xlu0 %42, %v15
  %v44 = vpop.permute.xlu0 %43
  %47 = vset.pattern.permute.xlu0 0
  %48 = vperm.xlu0 %47, %v16
  %v49 = vpop.permute.xlu0 %48
  %52 = vset.pattern.permute.xlu0 0
  %53 = vperm.xlu0 %52, %v17
  %v54 = vpop.permute.xlu0 %53
  %57 = vset.pattern.permute.xlu0 0
  %58 = vperm.xlu0 %57, %v18
  %v59 = vpop.permute.xlu0 %58
  %v61 = vlaneseq
  %v62 = vshrl.u32 %v61, 7
  %v63 = vsub.s32 0, %v62
  %v64 = vrot.slane %v19, %v63
  %v65 = vmul.f32 %v24, %v64
  %v66 = vmul.f32 %v29, %v64
  %v67 = vmul.f32 %v34, %v64
  %v68 = vmul.f32 %v39, %v64
  %v69 = vmul.f32 %v44, %v64
  %v70 = vmul.f32 %v49, %v64
  %v71 = vmul.f32 %v54, %v64
  %v72 = vmul.f32 %v59, %v64
  %v73 = vlaneseq
  %v74 = vshrl.u32 %v73, 7
  %v75 = vsub.s32 0, %v74
  %v76 = vrot.slane %v20, %v75
  %v77 = vadd.f32 %v65, %v76
  %v78 = vadd.f32 %v66, %v76
  %v79 = vadd.f32 %v67, %v76
  %v80 = vadd.f32 %v68, %v76
  %v81 = vadd.f32 %v69, %v76
  %v82 = vadd.f32 %v70, %v76
  %v83 = vadd.f32 %v71, %v76
  %v84 = vadd.f32 %v72, %v76
  %v85 = vand.u32 2147483647, %v77
  %vm86 = vcmp.le.f32.partialorder %v85, 0.7853982
  %vm87 = vcmp.lt.s32.totalorder %v77, 0
  %v88 = vand.u32 %v77, 2139095040
  %v89 = vshrl.u32 %v88, 23
  %v90 = vsub.s32 %v89, 127
  %v91 = vand.u32 2147483647, %v77
  %v92 = vand.u32 %v91, 8388607
  %v93 = vor.u32 %v92, 8388608
  %v94 = vsub.s32 0, %v93
  %v95 = vadd.s32 %v90, 1
  %vm96 = vcmp.gt.s32.totalorder %v95, 0
  %v97 = vsel %vm96, %v95, 0
  %v98 = vshrl.u32 %v97, 5
  %v99 = vand.u32 %v97, 31
  %v100 = vsub.s32 32, %v99
  %v101 = vshrl.u32 683565275, %v100
  %v102 = vshll.u32 683565275, %v99
  %v103 = vshrl.u32 2475754826, %v100
  %v104 = vor.u32 %v102, %v103
  %v105 = vshll.u32 2475754826, %v99
  %v106 = vshrl.u32 2131351028, %v100
  %v107 = vor.u32 %v105, %v106
  %v108 = vshll.u32 2131351028, %v99
  %v109 = vshrl.u32 2102212464, %v100
  %v110 = vor.u32 %v108, %v109
  %v111 = vshll.u32 2102212464, %v99
  %v112 = vshrl.u32 920167782, %v100
  %v113 = vor.u32 %v111, %v112
  %v114 = vshll.u32 920167782, %v99
  %v115 = vshrl.u32 1326507024, %v100
  %v116 = vor.u32 %v114, %v115
  %vm117 = vcmp.lt.s32.totalorder %v98, 1
  %vm118 = vcmp.lt.s32.totalorder %v98, 2
  %vm119 = vcmp.lt.s32.totalorder %v98, 3
  %vm120 = vcmp.lt.s32.totalorder %v98, 4
  %v121 = vsel %vm117, %v101, %v104
  %v122 = vsel %vm120, %v110, 2102212464
  %v123 = vsel %vm119, %v107, %v122
  %v124 = vsel %vm118, %v121, %v123
  %v125 = vsel %vm117, %v104, %v107
  %v126 = vsel %vm120, %v113, 920167782
  %v127 = vsel %vm119, %v110, %v126
  %v128 = vsel %vm118, %v125, %v127
  %v129 = vsel %vm117, %v107, %v110
  %v130 = vsel %vm120, %v116, 1326507024
  %v131 = vsel %vm119, %v113, %v130
  %v132 = vsel %vm118, %v129, %v131
  %v133 = vshll.u32 %v93, 8
  %v134 = vmul.u32.u64.compose %v133, %v132
  %v135 = vextract.low.u32 %v134
  %v136 = vextract.high.u32 %v134
  %v137 = vmul.u32.u64.compose %v133, %v128
  %v138 = vextract.low.u32 %v137
  %v139 = vextract.high.u32 %v137
  %v140 = vmul.u32 %v133, %v124
  %v141 = vadd.s32 %v136, %v138
  %vm142 = vc.u32 %v136, %v138
  %v143 = vadd.s32 %v139, 1
  %v144 = vsel %vm142, %v143, %v139
  %v145 = vadd.s32 %v140, %v144
  %v146 = vadd.s32 %v145, 536870912
  %v147 = vshrl.u32 %v146, 30
  %v148 = vshll.u32 %v147, 30
  %v149 = vsub.s32 %v145, %v148
  %vm150 = vcmp.lt.s32.totalorder %v149, 0
  %v151 = vsub.s32 0, %v149
  %v152 = vsel %vm150, %v151, %v149
  %v153 = vclz %v152
  %v154 = vsub.s32 %v153, 2
  %vm155 = vcmp.gt.s32.totalorder 0, %v154
  %v156 = vsel %vm155, 0, %v154
  %v157 = vsub.s32 32, %v156
  %v158 = vshll.u32 %v149, %v156
  %v159 = vshrl.u32 %v141, %v157
  %v160 = vor.u32 %v158, %v159
  %v161 = vsub.s32 4294967266, %v156
  %v162 = vadd.s32 %v161, 127
  %v163 = vshll.u32 %v162, 23
  %v164 = vor.u32 4788187, %v163
  %v165 = vand.u32 2147483647, %v164
  %v167 = vcvt.s32.f32 %v160
  %v168 = vmul.f32 %v167, %v165
  %v169 = vxor.u32 %v168, 2147483648
  %v170 = vsel %vm87, %v169, %v168
  %v171 = vsub.s32 4, %v147
  %v172 = vsel %vm87, %v171, %v147
  %v173 = vsel %vm86, %v77, %v170
  %v174 = vsel %vm86, 0, %v172
  %v175 = vcosq.f32.pop %v173
  %v176 = vsinq.f32.pop %v173
  %vm177 = vweird.f32 %v77
  %v178 = vadd.s32 %v174, 3
  %v179 = vand.u32 %v178, 3
  %vm180 = vcmp.lt.s32.totalorder %v179, 2
  %vm181 = vcmp.eq.s32.totalorder %v179, 0
  %v182 = vxor.u32 %v176, 2147483648
  %v183 = vsel %vm181, %v175, %v182
  %vm184 = vcmp.eq.s32.totalorder %v179, 2
  %v185 = vxor.u32 %v175, 2147483648
  %v186 = vsel %vm184, %v185, %v176
  %v187 = vsel %vm180, %v183, %v186
  %v188 = vsel %vm177, nan, %v187
  %v189 = vand.u32 2147483647, %v78
  %vm190 = vcmp.le.f32.partialorder %v189, 0.7853982
  %vm191 = vcmp.lt.s32.totalorder %v78, 0
  %v192 = vand.u32 %v78, 2139095040
  %v193 = vshrl.u32 %v192, 23
  %v194 = vsub.s32 %v193, 127
  %v195 = vand.u32 2147483647, %v78
  %v196 = vand.u32 %v195, 8388607
  %v197 = vor.u32 %v196, 8388608
  %v198 = vsub.s32 0, %v197
  %v199 = vadd.s32 %v194, 1
  %vm200 = vcmp.gt.s32.totalorder %v199, 0
  %v201 = vsel %vm200, %v199, 0
  %v202 = vshrl.u32 %v201, 5
  %v203 = vand.u32 %v201, 31
  %v204 = vsub.s32 32, %v203
  %v205 = vshrl.u32 683565275, %v204
  %v206 = vshll.u32 683565275, %v203
  %v207 = vshrl.u32 2475754826, %v204
  %v208 = vor.u32 %v206, %v207
  %v209 = vshll.u32 2475754826, %v203
  %v210 = vshrl.u32 2131351028, %v204
  %v211 = vor.u32 %v209, %v210
  %v212 = vshll.u32 2131351028, %v203
  %v213 = vshrl.u32 2102212464, %v204
  %v214 = vor.u32 %v212, %v213
  %v215 = vshll.u32 2102212464, %v203
  %v216 = vshrl.u32 920167782, %v204
  %v217 = vor.u32 %v215, %v216
  %v218 = vshll.u32 920167782, %v203
  %v219 = vshrl.u32 1326507024, %v204
  %v220 = vor.u32 %v218, %v219
  %vm221 = vcmp.lt.s32.totalorder %v202, 1
  %vm222 = vcmp.lt.s32.totalorder %v202, 2
  %vm223 = vcmp.lt.s32.totalorder %v202, 3
  %vm224 = vcmp.lt.s32.totalorder %v202, 4
  %v225 = vsel %vm221, %v205, %v208
  %v226 = vsel %vm224, %v214, 2102212464
  %v227 = vsel %vm223, %v211, %v226
  %v228 = vsel %vm222, %v225, %v227
  %v229 = vsel %vm221, %v208, %v211
  %v230 = vsel %vm224, %v217, 920167782
  %v231 = vsel %vm223, %v214, %v230
  %v232 = vsel %vm222, %v229, %v231
  %v233 = vsel %vm221, %v211, %v214
  %v234 = vsel %vm224, %v220, 1326507024
  %v235 = vsel %vm223, %v217, %v234
  %v236 = vsel %vm222, %v233, %v235
  %v237 = vshll.u32 %v197, 8
  %v238 = vmul.u32.u64.compose %v237, %v236
  %v239 = vextract.low.u32 %v238
  %v240 = vextract.high.u32 %v238
  %v241 = vmul.u32.u64.compose %v237, %v232
  %v242 = vextract.low.u32 %v241
  %v243 = vextract.high.u32 %v241
  %v244 = vmul.u32 %v237, %v228
  %v245 = vadd.s32 %v240, %v242
  %vm246 = vc.u32 %v240, %v242
  %v247 = vadd.s32 %v243, 1
  %v248 = vsel %vm246, %v247, %v243
  %v249 = vadd.s32 %v244, %v248
  %v250 = vadd.s32 %v249, 536870912
  %v251 = vshrl.u32 %v250, 30
  %v252 = vshll.u32 %v251, 30
  %v253 = vsub.s32 %v249, %v252
  %vm254 = vcmp.lt.s32.totalorder %v253, 0
  %v255 = vsub.s32 0, %v253
  %v256 = vsel %vm254, %v255, %v253
  %v257 = vclz %v256
  %v258 = vsub.s32 %v257, 2
  %vm259 = vcmp.gt.s32.totalorder 0, %v258
  %v260 = vsel %vm259, 0, %v258
  %v261 = vsub.s32 32, %v260
  %v262 = vshll.u32 %v253, %v260
  %v263 = vshrl.u32 %v245, %v261
  %v264 = vor.u32 %v262, %v263
  %v265 = vsub.s32 4294967266, %v260
  %v266 = vadd.s32 %v265, 127
  %v267 = vshll.u32 %v266, 23
  %v268 = vor.u32 4788187, %v267
  %v269 = vand.u32 2147483647, %v268
  %v271 = vcvt.s32.f32 %v264
  %v272 = vmul.f32 %v271, %v269
  %v273 = vxor.u32 %v272, 2147483648
  %v274 = vsel %vm191, %v273, %v272
  %v275 = vsub.s32 4, %v251
  %v276 = vsel %vm191, %v275, %v251
  %v277 = vsel %vm190, %v78, %v274
  %v278 = vsel %vm190, 0, %v276
  %v279 = vcosq.f32.pop %v277
  %v280 = vsinq.f32.pop %v277
  %vm281 = vweird.f32 %v78
  %v282 = vadd.s32 %v278, 3
  %v283 = vand.u32 %v282, 3
  %vm284 = vcmp.lt.s32.totalorder %v283, 2
  %vm285 = vcmp.eq.s32.totalorder %v283, 0
  %v286 = vxor.u32 %v280, 2147483648
  %v287 = vsel %vm285, %v279, %v286
  %vm288 = vcmp.eq.s32.totalorder %v283, 2
  %v289 = vxor.u32 %v279, 2147483648
  %v290 = vsel %vm288, %v289, %v280
  %v291 = vsel %vm284, %v287, %v290
  %v292 = vsel %vm281, nan, %v291
  %v293 = vand.u32 2147483647, %v79
  %vm294 = vcmp.le.f32.partialorder %v293, 0.7853982
  %vm295 = vcmp.lt.s32.totalorder %v79, 0
  %v296 = vand.u32 %v79, 2139095040
  %v297 = vshrl.u32 %v296, 23
  %v298 = vsub.s32 %v297, 127
  %v299 = vand.u32 2147483647, %v79
  %v300 = vand.u32 %v299, 8388607
  %v301 = vor.u32 %v300, 8388608
  %v302 = vsub.s32 0, %v301
  %v303 = vadd.s32 %v298, 1
  %vm304 = vcmp.gt.s32.totalorder %v303, 0
  %v305 = vsel %vm304, %v303, 0
  %v306 = vshrl.u32 %v305, 5
  %v307 = vand.u32 %v305, 31
  %v308 = vsub.s32 32, %v307
  %v309 = vshrl.u32 683565275, %v308
  %v310 = vshll.u32 683565275, %v307
  %v311 = vshrl.u32 2475754826, %v308
  %v312 = vor.u32 %v310, %v311
  %v313 = vshll.u32 2475754826, %v307
  %v314 = vshrl.u32 2131351028, %v308
  %v315 = vor.u32 %v313, %v314
  %v316 = vshll.u32 2131351028, %v307
  %v317 = vshrl.u32 2102212464, %v308
  %v318 = vor.u32 %v316, %v317
  %v319 = vshll.u32 2102212464, %v307
  %v320 = vshrl.u32 920167782, %v308
  %v321 = vor.u32 %v319, %v320
  %v322 = vshll.u32 920167782, %v307
  %v323 = vshrl.u32 1326507024, %v308
  %v324 = vor.u32 %v322, %v323
  %vm325 = vcmp.lt.s32.totalorder %v306, 1
  %vm326 = vcmp.lt.s32.totalorder %v306, 2
  %vm327 = vcmp.lt.s32.totalorder %v306, 3
  %vm328 = vcmp.lt.s32.totalorder %v306, 4
  %v329 = vsel %vm325, %v309, %v312
  %v330 = vsel %vm328, %v318, 2102212464
  %v331 = vsel %vm327, %v315, %v330
  %v332 = vsel %vm326, %v329, %v331
  %v333 = vsel %vm325, %v312, %v315
  %v334 = vsel %vm328, %v321, 920167782
  %v335 = vsel %vm327, %v318, %v334
  %v336 = vsel %vm326, %v333, %v335
  %v337 = vsel %vm325, %v315, %v318
  %v338 = vsel %vm328, %v324, 1326507024
  %v339 = vsel %vm327, %v321, %v338
  %v340 = vsel %vm326, %v337, %v339
  %v341 = vshll.u32 %v301, 8
  %v342 = vmul.u32.u64.compose %v341, %v340
  %v343 = vextract.low.u32 %v342
  %v344 = vextract.high.u32 %v342
  %v345 = vmul.u32.u64.compose %v341, %v336
  %v346 = vextract.low.u32 %v345
  %v347 = vextract.high.u32 %v345
  %v348 = vmul.u32 %v341, %v332
  %v349 = vadd.s32 %v344, %v346
  %vm350 = vc.u32 %v344, %v346
  %v351 = vadd.s32 %v347, 1
  %v352 = vsel %vm350, %v351, %v347
  %v353 = vadd.s32 %v348, %v352
  %v354 = vadd.s32 %v353, 536870912
  %v355 = vshrl.u32 %v354, 30
  %v356 = vshll.u32 %v355, 30
  %v357 = vsub.s32 %v353, %v356
  %vm358 = vcmp.lt.s32.totalorder %v357, 0
  %v359 = vsub.s32 0, %v357
  %v360 = vsel %vm358, %v359, %v357
  %v361 = vclz %v360
  %v362 = vsub.s32 %v361, 2
  %vm363 = vcmp.gt.s32.totalorder 0, %v362
  %v364 = vsel %vm363, 0, %v362
  %v365 = vsub.s32 32, %v364
  %v366 = vshll.u32 %v357, %v364
  %v367 = vshrl.u32 %v349, %v365
  %v368 = vor.u32 %v366, %v367
  %v369 = vsub.s32 4294967266, %v364
  %v370 = vadd.s32 %v369, 127
  %v371 = vshll.u32 %v370, 23
  %v372 = vor.u32 4788187, %v371
  %v373 = vand.u32 2147483647, %v372
  %v375 = vcvt.s32.f32 %v368
  %v376 = vmul.f32 %v375, %v373
  %v377 = vxor.u32 %v376, 2147483648
  %v378 = vsel %vm295, %v377, %v376
  %v379 = vsub.s32 4, %v355
  %v380 = vsel %vm295, %v379, %v355
  %v381 = vsel %vm294, %v79, %v378
  %v382 = vsel %vm294, 0, %v380
  %v383 = vcosq.f32.pop %v381
  %v384 = vsinq.f32.pop %v381
  %vm385 = vweird.f32 %v79
  %v386 = vadd.s32 %v382, 3
  %v387 = vand.u32 %v386, 3
  %vm388 = vcmp.lt.s32.totalorder %v387, 2
  %vm389 = vcmp.eq.s32.totalorder %v387, 0
  %v390 = vxor.u32 %v384, 2147483648
  %v391 = vsel %vm389, %v383, %v390
  %vm392 = vcmp.eq.s32.totalorder %v387, 2
  %v393 = vxor.u32 %v383, 2147483648
  %v394 = vsel %vm392, %v393, %v384
  %v395 = vsel %vm388, %v391, %v394
  %v396 = vsel %vm385, nan, %v395
  %v397 = vand.u32 2147483647, %v80
  %vm398 = vcmp.le.f32.partialorder %v397, 0.7853982
  %vm399 = vcmp.lt.s32.totalorder %v80, 0
  %v400 = vand.u32 %v80, 2139095040
  %v401 = vshrl.u32 %v400, 23
  %v402 = vsub.s32 %v401, 127
  %v403 = vand.u32 2147483647, %v80
  %v404 = vand.u32 %v403, 8388607
  %v405 = vor.u32 %v404, 8388608
  %v406 = vsub.s32 0, %v405
  %v407 = vadd.s32 %v402, 1
  %vm408 = vcmp.gt.s32.totalorder %v407, 0
  %v409 = vsel %vm408, %v407, 0
  %v410 = vshrl.u32 %v409, 5
  %v411 = vand.u32 %v409, 31
  %v412 = vsub.s32 32, %v411
  %v413 = vshrl.u32 683565275, %v412
  %v414 = vshll.u32 683565275, %v411
  %v415 = vshrl.u32 2475754826, %v412
  %v416 = vor.u32 %v414, %v415
  %v417 = vshll.u32 2475754826, %v411
  %v418 = vshrl.u32 2131351028, %v412
  %v419 = vor.u32 %v417, %v418
  %v420 = vshll.u32 2131351028, %v411
  %v421 = vshrl.u32 2102212464, %v412
  %v422 = vor.u32 %v420, %v421
  %v423 = vshll.u32 2102212464, %v411
  %v424 = vshrl.u32 920167782, %v412
  %v425 = vor.u32 %v423, %v424
  %v426 = vshll.u32 920167782, %v411
  %v427 = vshrl.u32 1326507024, %v412
  %v428 = vor.u32 %v426, %v427
  %vm429 = vcmp.lt.s32.totalorder %v410, 1
  %vm430 = vcmp.lt.s32.totalorder %v410, 2
  %vm431 = vcmp.lt.s32.totalorder %v410, 3
  %vm432 = vcmp.lt.s32.totalorder %v410, 4
  %v433 = vsel %vm429, %v413, %v416
  %v434 = vsel %vm432, %v422, 2102212464
  %v435 = vsel %vm431, %v419, %v434
  %v436 = vsel %vm430, %v433, %v435
  %v437 = vsel %vm429, %v416, %v419
  %v438 = vsel %vm432, %v425, 920167782
  %v439 = vsel %vm431, %v422, %v438
  %v440 = vsel %vm430, %v437, %v439
  %v441 = vsel %vm429, %v419, %v422
  %v442 = vsel %vm432, %v428, 1326507024
  %v443 = vsel %vm431, %v425, %v442
  %v444 = vsel %vm430, %v441, %v443
  %v445 = vshll.u32 %v405, 8
  %v446 = vmul.u32.u64.compose %v445, %v444
  %v447 = vextract.low.u32 %v446
  %v448 = vextract.high.u32 %v446
  %v449 = vmul.u32.u64.compose %v445, %v440
  %v450 = vextract.low.u32 %v449
  %v451 = vextract.high.u32 %v449
  %v452 = vmul.u32 %v445, %v436
  %v453 = vadd.s32 %v448, %v450
  %vm454 = vc.u32 %v448, %v450
  %v455 = vadd.s32 %v451, 1
  %v456 = vsel %vm454, %v455, %v451
  %v457 = vadd.s32 %v452, %v456
  %v458 = vadd.s32 %v457, 536870912
  %v459 = vshrl.u32 %v458, 30
  %v460 = vshll.u32 %v459, 30
  %v461 = vsub.s32 %v457, %v460
  %vm462 = vcmp.lt.s32.totalorder %v461, 0
  %v463 = vsub.s32 0, %v461
  %v464 = vsel %vm462, %v463, %v461
  %v465 = vclz %v464
  %v466 = vsub.s32 %v465, 2
  %vm467 = vcmp.gt.s32.totalorder 0, %v466
  %v468 = vsel %vm467, 0, %v466
  %v469 = vsub.s32 32, %v468
  %v470 = vshll.u32 %v461, %v468
  %v471 = vshrl.u32 %v453, %v469
  %v472 = vor.u32 %v470, %v471
  %v473 = vsub.s32 4294967266, %v468
  %v474 = vadd.s32 %v473, 127
  %v475 = vshll.u32 %v474, 23
  %v476 = vor.u32 4788187, %v475
  %v477 = vand.u32 2147483647, %v476
  %v479 = vcvt.s32.f32 %v472
  %v480 = vmul.f32 %v479, %v477
  %v481 = vxor.u32 %v480, 2147483648
  %v482 = vsel %vm399, %v481, %v480
  %v483 = vsub.s32 4, %v459
  %v484 = vsel %vm399, %v483, %v459
  %v485 = vsel %vm398, %v80, %v482
  %v486 = vsel %vm398, 0, %v484
  %v487 = vcosq.f32.pop %v485
  %v488 = vsinq.f32.pop %v485
  %vm489 = vweird.f32 %v80
  %v490 = vadd.s32 %v486, 3
  %v491 = vand.u32 %v490, 3
  %vm492 = vcmp.lt.s32.totalorder %v491, 2
  %vm493 = vcmp.eq.s32.totalorder %v491, 0
  %v494 = vxor.u32 %v488, 2147483648
  %v495 = vsel %vm493, %v487, %v494
  %vm496 = vcmp.eq.s32.totalorder %v491, 2
  %v497 = vxor.u32 %v487, 2147483648
  %v498 = vsel %vm496, %v497, %v488
  %v499 = vsel %vm492, %v495, %v498
  %v500 = vsel %vm489, nan, %v499
  %v501 = vand.u32 2147483647, %v81
  %vm502 = vcmp.le.f32.partialorder %v501, 0.7853982
  %vm503 = vcmp.lt.s32.totalorder %v81, 0
  %v504 = vand.u32 %v81, 2139095040
  %v505 = vshrl.u32 %v504, 23
  %v506 = vsub.s32 %v505, 127
  %v507 = vand.u32 2147483647, %v81
  %v508 = vand.u32 %v507, 8388607
  %v509 = vor.u32 %v508, 8388608
  %v510 = vsub.s32 0, %v509
  %v511 = vadd.s32 %v506, 1
  %vm512 = vcmp.gt.s32.totalorder %v511, 0
  %v513 = vsel %vm512, %v511, 0
  %v514 = vshrl.u32 %v513, 5
  %v515 = vand.u32 %v513, 31
  %v516 = vsub.s32 32, %v515
  %v517 = vshrl.u32 683565275, %v516
  %v518 = vshll.u32 683565275, %v515
  %v519 = vshrl.u32 2475754826, %v516
  %v520 = vor.u32 %v518, %v519
  %v521 = vshll.u32 2475754826, %v515
  %v522 = vshrl.u32 2131351028, %v516
  %v523 = vor.u32 %v521, %v522
  %v524 = vshll.u32 2131351028, %v515
  %v525 = vshrl.u32 2102212464, %v516
  %v526 = vor.u32 %v524, %v525
  %v527 = vshll.u32 2102212464, %v515
  %v528 = vshrl.u32 920167782, %v516
  %v529 = vor.u32 %v527, %v528
  %v530 = vshll.u32 920167782, %v515
  %v531 = vshrl.u32 1326507024, %v516
  %v532 = vor.u32 %v530, %v531
  %vm533 = vcmp.lt.s32.totalorder %v514, 1
  %vm534 = vcmp.lt.s32.totalorder %v514, 2
  %vm535 = vcmp.lt.s32.totalorder %v514, 3
  %vm536 = vcmp.lt.s32.totalorder %v514, 4
  %v537 = vsel %vm533, %v517, %v520
  %v538 = vsel %vm536, %v526, 2102212464
  %v539 = vsel %vm535, %v523, %v538
  %v540 = vsel %vm534, %v537, %v539
  %v541 = vsel %vm533, %v520, %v523
  %v542 = vsel %vm536, %v529, 920167782
  %v543 = vsel %vm535, %v526, %v542
  %v544 = vsel %vm534, %v541, %v543
  %v545 = vsel %vm533, %v523, %v526
  %v546 = vsel %vm536, %v532, 1326507024
  %v547 = vsel %vm535, %v529, %v546
  %v548 = vsel %vm534, %v545, %v547
  %v549 = vshll.u32 %v509, 8
  %v550 = vmul.u32.u64.compose %v549, %v548
  %v551 = vextract.low.u32 %v550
  %v552 = vextract.high.u32 %v550
  %v553 = vmul.u32.u64.compose %v549, %v544
  %v554 = vextract.low.u32 %v553
  %v555 = vextract.high.u32 %v553
  %v556 = vmul.u32 %v549, %v540
  %v557 = vadd.s32 %v552, %v554
  %vm558 = vc.u32 %v552, %v554
  %v559 = vadd.s32 %v555, 1
  %v560 = vsel %vm558, %v559, %v555
  %v561 = vadd.s32 %v556, %v560
  %v562 = vadd.s32 %v561, 536870912
  %v563 = vshrl.u32 %v562, 30
  %v564 = vshll.u32 %v563, 30
  %v565 = vsub.s32 %v561, %v564
  %vm566 = vcmp.lt.s32.totalorder %v565, 0
  %v567 = vsub.s32 0, %v565
  %v568 = vsel %vm566, %v567, %v565
  %v569 = vclz %v568
  %v570 = vsub.s32 %v569, 2
  %vm571 = vcmp.gt.s32.totalorder 0, %v570
  %v572 = vsel %vm571, 0, %v570
  %v573 = vsub.s32 32, %v572
  %v574 = vshll.u32 %v565, %v572
  %v575 = vshrl.u32 %v557, %v573
  %v576 = vor.u32 %v574, %v575
  %v577 = vsub.s32 4294967266, %v572
  %v578 = vadd.s32 %v577, 127
  %v579 = vshll.u32 %v578, 23
  %v580 = vor.u32 4788187, %v579
  %v581 = vand.u32 2147483647, %v580
  %v583 = vcvt.s32.f32 %v576
  %v584 = vmul.f32 %v583, %v581
  %v585 = vxor.u32 %v584, 2147483648
  %v586 = vsel %vm503, %v585, %v584
  %v587 = vsub.s32 4, %v563
  %v588 = vsel %vm503, %v587, %v563
  %v589 = vsel %vm502, %v81, %v586
  %v590 = vsel %vm502, 0, %v588
  %v591 = vcosq.f32.pop %v589
  %v592 = vsinq.f32.pop %v589
  %vm593 = vweird.f32 %v81
  %v594 = vadd.s32 %v590, 3
  %v595 = vand.u32 %v594, 3
  %vm596 = vcmp.lt.s32.totalorder %v595, 2
  %vm597 = vcmp.eq.s32.totalorder %v595, 0
  %v598 = vxor.u32 %v592, 2147483648
  %v599 = vsel %vm597, %v591, %v598
  %vm600 = vcmp.eq.s32.totalorder %v595, 2
  %v601 = vxor.u32 %v591, 2147483648
  %v602 = vsel %vm600, %v601, %v592
  %v603 = vsel %vm596, %v599, %v602
  %v604 = vsel %vm593, nan, %v603
  %v605 = vand.u32 2147483647, %v82
  %vm606 = vcmp.le.f32.partialorder %v605, 0.7853982
  %vm607 = vcmp.lt.s32.totalorder %v82, 0
  %v608 = vand.u32 %v82, 2139095040
  %v609 = vshrl.u32 %v608, 23
  %v610 = vsub.s32 %v609, 127
  %v611 = vand.u32 2147483647, %v82
  %v612 = vand.u32 %v611, 8388607
  %v613 = vor.u32 %v612, 8388608
  %v614 = vsub.s32 0, %v613
  %v615 = vadd.s32 %v610, 1
  %vm616 = vcmp.gt.s32.totalorder %v615, 0
  %v617 = vsel %vm616, %v615, 0
  %v618 = vshrl.u32 %v617, 5
  %v619 = vand.u32 %v617, 31
  %v620 = vsub.s32 32, %v619
  %v621 = vshrl.u32 683565275, %v620
  %v622 = vshll.u32 683565275, %v619
  %v623 = vshrl.u32 2475754826, %v620
  %v624 = vor.u32 %v622, %v623
  %v625 = vshll.u32 2475754826, %v619
  %v626 = vshrl.u32 2131351028, %v620
  %v627 = vor.u32 %v625, %v626
  %v628 = vshll.u32 2131351028, %v619
  %v629 = vshrl.u32 2102212464, %v620
  %v630 = vor.u32 %v628, %v629
  %v631 = vshll.u32 2102212464, %v619
  %v632 = vshrl.u32 920167782, %v620
  %v633 = vor.u32 %v631, %v632
  %v634 = vshll.u32 920167782, %v619
  %v635 = vshrl.u32 1326507024, %v620
  %v636 = vor.u32 %v634, %v635
  %vm637 = vcmp.lt.s32.totalorder %v618, 1
  %vm638 = vcmp.lt.s32.totalorder %v618, 2
  %vm639 = vcmp.lt.s32.totalorder %v618, 3
  %vm640 = vcmp.lt.s32.totalorder %v618, 4
  %v641 = vsel %vm637, %v621, %v624
  %v642 = vsel %vm640, %v630, 2102212464
  %v643 = vsel %vm639, %v627, %v642
  %v644 = vsel %vm638, %v641, %v643
  %v645 = vsel %vm637, %v624, %v627
  %v646 = vsel %vm640, %v633, 920167782
  %v647 = vsel %vm639, %v630, %v646
  %v648 = vsel %vm638, %v645, %v647
  %v649 = vsel %vm637, %v627, %v630
  %v650 = vsel %vm640, %v636, 1326507024
  %v651 = vsel %vm639, %v633, %v650
  %v652 = vsel %vm638, %v649, %v651
  %v653 = vshll.u32 %v613, 8
  %v654 = vmul.u32.u64.compose %v653, %v652
  %v655 = vextract.low.u32 %v654
  %v656 = vextract.high.u32 %v654
  %v657 = vmul.u32.u64.compose %v653, %v648
  %v658 = vextract.low.u32 %v657
  %v659 = vextract.high.u32 %v657
  %v660 = vmul.u32 %v653, %v644
  %v661 = vadd.s32 %v656, %v658
  %vm662 = vc.u32 %v656, %v658
  %v663 = vadd.s32 %v659, 1
  %v664 = vsel %vm662, %v663, %v659
  %v665 = vadd.s32 %v660, %v664
  %v666 = vadd.s32 %v665, 536870912
  %v667 = vshrl.u32 %v666, 30
  %v668 = vshll.u32 %v667, 30
  %v669 = vsub.s32 %v665, %v668
  %vm670 = vcmp.lt.s32.totalorder %v669, 0
  %v671 = vsub.s32 0, %v669
  %v672 = vsel %vm670, %v671, %v669
  %v673 = vclz %v672
  %v674 = vsub.s32 %v673, 2
  %vm675 = vcmp.gt.s32.totalorder 0, %v674
  %v676 = vsel %vm675, 0, %v674
  %v677 = vsub.s32 32, %v676
  %v678 = vshll.u32 %v669, %v676
  %v679 = vshrl.u32 %v661, %v677
  %v680 = vor.u32 %v678, %v679
  %v681 = vsub.s32 4294967266, %v676
  %v682 = vadd.s32 %v681, 127
  %v683 = vshll.u32 %v682, 23
  %v684 = vor.u32 4788187, %v683
  %v685 = vand.u32 2147483647, %v684
  %v687 = vcvt.s32.f32 %v680
  %v688 = vmul.f32 %v687, %v685
  %v689 = vxor.u32 %v688, 2147483648
  %v690 = vsel %vm607, %v689, %v688
  %v691 = vsub.s32 4, %v667
  %v692 = vsel %vm607, %v691, %v667
  %v693 = vsel %vm606, %v82, %v690
  %v694 = vsel %vm606, 0, %v692
  %v695 = vcosq.f32.pop %v693
  %v696 = vsinq.f32.pop %v693
  %vm697 = vweird.f32 %v82
  %v698 = vadd.s32 %v694, 3
  %v699 = vand.u32 %v698, 3
  %vm700 = vcmp.lt.s32.totalorder %v699, 2
  %vm701 = vcmp.eq.s32.totalorder %v699, 0
  %v702 = vxor.u32 %v696, 2147483648
  %v703 = vsel %vm701, %v695, %v702
  %vm704 = vcmp.eq.s32.totalorder %v699, 2
  %v705 = vxor.u32 %v695, 2147483648
  %v706 = vsel %vm704, %v705, %v696
  %v707 = vsel %vm700, %v703, %v706
  %v708 = vsel %vm697, nan, %v707
  %v709 = vand.u32 2147483647, %v83
  %vm710 = vcmp.le.f32.partialorder %v709, 0.7853982
  %vm711 = vcmp.lt.s32.totalorder %v83, 0
  %v712 = vand.u32 %v83, 2139095040
  %v713 = vshrl.u32 %v712, 23
  %v714 = vsub.s32 %v713, 127
  %v715 = vand.u32 2147483647, %v83
  %v716 = vand.u32 %v715, 8388607
  %v717 = vor.u32 %v716, 8388608
  %v718 = vsub.s32 0, %v717
  %v719 = vadd.s32 %v714, 1
  %vm720 = vcmp.gt.s32.totalorder %v719, 0
  %v721 = vsel %vm720, %v719, 0
  %v722 = vshrl.u32 %v721, 5
  %v723 = vand.u32 %v721, 31
  %v724 = vsub.s32 32, %v723
  %v725 = vshrl.u32 683565275, %v724
  %v726 = vshll.u32 683565275, %v723
  %v727 = vshrl.u32 2475754826, %v724
  %v728 = vor.u32 %v726, %v727
  %v729 = vshll.u32 2475754826, %v723
  %v730 = vshrl.u32 2131351028, %v724
  %v731 = vor.u32 %v729, %v730
  %v732 = vshll.u32 2131351028, %v723
  %v733 = vshrl.u32 2102212464, %v724
  %v734 = vor.u32 %v732, %v733
  %v735 = vshll.u32 2102212464, %v723
  %v736 = vshrl.u32 920167782, %v724
  %v737 = vor.u32 %v735, %v736
  %v738 = vshll.u32 920167782, %v723
  %v739 = vshrl.u32 1326507024, %v724
  %v740 = vor.u32 %v738, %v739
  %vm741 = vcmp.lt.s32.totalorder %v722, 1
  %vm742 = vcmp.lt.s32.totalorder %v722, 2
  %vm743 = vcmp.lt.s32.totalorder %v722, 3
  %vm744 = vcmp.lt.s32.totalorder %v722, 4
  %v745 = vsel %vm741, %v725, %v728
  %v746 = vsel %vm744, %v734, 2102212464
  %v747 = vsel %vm743, %v731, %v746
  %v748 = vsel %vm742, %v745, %v747
  %v749 = vsel %vm741, %v728, %v731
  %v750 = vsel %vm744, %v737, 920167782
  %v751 = vsel %vm743, %v734, %v750
  %v752 = vsel %vm742, %v749, %v751
  %v753 = vsel %vm741, %v731, %v734
  %v754 = vsel %vm744, %v740, 1326507024
  %v755 = vsel %vm743, %v737, %v754
  %v756 = vsel %vm742, %v753, %v755
  %v757 = vshll.u32 %v717, 8
  %v758 = vmul.u32.u64.compose %v757, %v756
  %v759 = vextract.low.u32 %v758
  %v760 = vextract.high.u32 %v758
  %v761 = vmul.u32.u64.compose %v757, %v752
  %v762 = vextract.low.u32 %v761
  %v763 = vextract.high.u32 %v761
  %v764 = vmul.u32 %v757, %v748
  %v765 = vadd.s32 %v760, %v762
  %vm766 = vc.u32 %v760, %v762
  %v767 = vadd.s32 %v763, 1
  %v768 = vsel %vm766, %v767, %v763
  %v769 = vadd.s32 %v764, %v768
  %v770 = vadd.s32 %v769, 536870912
  %v771 = vshrl.u32 %v770, 30
  %v772 = vshll.u32 %v771, 30
  %v773 = vsub.s32 %v769, %v772
  %vm774 = vcmp.lt.s32.totalorder %v773, 0
  %v775 = vsub.s32 0, %v773
  %v776 = vsel %vm774, %v775, %v773
  %v777 = vclz %v776
  %v778 = vsub.s32 %v777, 2
  %vm779 = vcmp.gt.s32.totalorder 0, %v778
  %v780 = vsel %vm779, 0, %v778
  %v781 = vsub.s32 32, %v780
  %v782 = vshll.u32 %v773, %v780
  %v783 = vshrl.u32 %v765, %v781
  %v784 = vor.u32 %v782, %v783
  %v785 = vsub.s32 4294967266, %v780
  %v786 = vadd.s32 %v785, 127
  %v787 = vshll.u32 %v786, 23
  %v788 = vor.u32 4788187, %v787
  %v789 = vand.u32 2147483647, %v788
  %v791 = vcvt.s32.f32 %v784
  %v792 = vmul.f32 %v791, %v789
  %v793 = vxor.u32 %v792, 2147483648
  %v794 = vsel %vm711, %v793, %v792
  %v795 = vsub.s32 4, %v771
  %v796 = vsel %vm711, %v795, %v771
  %v797 = vsel %vm710, %v83, %v794
  %v798 = vsel %vm710, 0, %v796
  %v799 = vcosq.f32.pop %v797
  %v800 = vsinq.f32.pop %v797
  %vm801 = vweird.f32 %v83
  %v802 = vadd.s32 %v798, 3
  %v803 = vand.u32 %v802, 3
  %vm804 = vcmp.lt.s32.totalorder %v803, 2
  %vm805 = vcmp.eq.s32.totalorder %v803, 0
  %v806 = vxor.u32 %v800, 2147483648
  %v807 = vsel %vm805, %v799, %v806
  %vm808 = vcmp.eq.s32.totalorder %v803, 2
  %v809 = vxor.u32 %v799, 2147483648
  %v810 = vsel %vm808, %v809, %v800
  %v811 = vsel %vm804, %v807, %v810
  %v812 = vsel %vm801, nan, %v811
  %v813 = vand.u32 2147483647, %v84
  %vm814 = vcmp.le.f32.partialorder %v813, 0.7853982
  %vm815 = vcmp.lt.s32.totalorder %v84, 0
  %v816 = vand.u32 %v84, 2139095040
  %v817 = vshrl.u32 %v816, 23
  %v818 = vsub.s32 %v817, 127
  %v819 = vand.u32 2147483647, %v84
  %v820 = vand.u32 %v819, 8388607
  %v821 = vor.u32 %v820, 8388608
  %v822 = vsub.s32 0, %v821
  %v823 = vadd.s32 %v818, 1
  %vm824 = vcmp.gt.s32.totalorder %v823, 0
  %v825 = vsel %vm824, %v823, 0
  %v826 = vshrl.u32 %v825, 5
  %v827 = vand.u32 %v825, 31
  %v828 = vsub.s32 32, %v827
  %v829 = vshrl.u32 683565275, %v828
  %v830 = vshll.u32 683565275, %v827
  %v831 = vshrl.u32 2475754826, %v828
  %v832 = vor.u32 %v830, %v831
  %v833 = vshll.u32 2475754826, %v827
  %v834 = vshrl.u32 2131351028, %v828
  %v835 = vor.u32 %v833, %v834
  %v836 = vshll.u32 2131351028, %v827
  %v837 = vshrl.u32 2102212464, %v828
  %v838 = vor.u32 %v836, %v837
  %v839 = vshll.u32 2102212464, %v827
  %v840 = vshrl.u32 920167782, %v828
  %v841 = vor.u32 %v839, %v840
  %v842 = vshll.u32 920167782, %v827
  %v843 = vshrl.u32 1326507024, %v828
  %v844 = vor.u32 %v842, %v843
  %vm845 = vcmp.lt.s32.totalorder %v826, 1
  %vm846 = vcmp.lt.s32.totalorder %v826, 2
  %vm847 = vcmp.lt.s32.totalorder %v826, 3
  %vm848 = vcmp.lt.s32.totalorder %v826, 4
  %v849 = vsel %vm845, %v829, %v832
  %v850 = vsel %vm848, %v838, 2102212464
  %v851 = vsel %vm847, %v835, %v850
  %v852 = vsel %vm846, %v849, %v851
  %v853 = vsel %vm845, %v832, %v835
  %v854 = vsel %vm848, %v841, 920167782
  %v855 = vsel %vm847, %v838, %v854
  %v856 = vsel %vm846, %v853, %v855
  %v857 = vsel %vm845, %v835, %v838
  %v858 = vsel %vm848, %v844, 1326507024
  %v859 = vsel %vm847, %v841, %v858
  %v860 = vsel %vm846, %v857, %v859
  %v861 = vshll.u32 %v821, 8
  %v862 = vmul.u32.u64.compose %v861, %v860
  %v863 = vextract.low.u32 %v862
  %v864 = vextract.high.u32 %v862
  %v865 = vmul.u32.u64.compose %v861, %v856
  %v866 = vextract.low.u32 %v865
  %v867 = vextract.high.u32 %v865
  %v868 = vmul.u32 %v861, %v852
  %v869 = vadd.s32 %v864, %v866
  %vm870 = vc.u32 %v864, %v866
  %v871 = vadd.s32 %v867, 1
  %v872 = vsel %vm870, %v871, %v867
  %v873 = vadd.s32 %v868, %v872
  %v874 = vadd.s32 %v873, 536870912
  %v875 = vshrl.u32 %v874, 30
  %v876 = vshll.u32 %v875, 30
  %v877 = vsub.s32 %v873, %v876
  %vm878 = vcmp.lt.s32.totalorder %v877, 0
  %v879 = vsub.s32 0, %v877
  %v880 = vsel %vm878, %v879, %v877
  %v881 = vclz %v880
  %v882 = vsub.s32 %v881, 2
  %vm883 = vcmp.gt.s32.totalorder 0, %v882
  %v884 = vsel %vm883, 0, %v882
  %v885 = vsub.s32 32, %v884
  %v886 = vshll.u32 %v877, %v884
  %v887 = vshrl.u32 %v869, %v885
  %v888 = vor.u32 %v886, %v887
  %v889 = vsub.s32 4294967266, %v884
  %v890 = vadd.s32 %v889, 127
  %v891 = vshll.u32 %v890, 23
  %v892 = vor.u32 4788187, %v891
  %v893 = vand.u32 2147483647, %v892
  %v895 = vcvt.s32.f32 %v888
  %v896 = vmul.f32 %v895, %v893
  %v897 = vxor.u32 %v896, 2147483648
  %v898 = vsel %vm815, %v897, %v896
  %v899 = vsub.s32 4, %v875
  %v900 = vsel %vm815, %v899, %v875
  %v901 = vsel %vm814, %v84, %v898
  %v902 = vsel %vm814, 0, %v900
  %v903 = vcosq.f32.pop %v901
  %v904 = vsinq.f32.pop %v901
  %vm905 = vweird.f32 %v84
  %v906 = vadd.s32 %v902, 3
  %v907 = vand.u32 %v906, 3
  %vm908 = vcmp.lt.s32.totalorder %v907, 2
  %vm909 = vcmp.eq.s32.totalorder %v907, 0
  %v910 = vxor.u32 %v904, 2147483648
  %v911 = vsel %vm909, %v903, %v910
  %vm912 = vcmp.eq.s32.totalorder %v907, 2
  %v913 = vxor.u32 %v903, 2147483648
  %v914 = vsel %vm912, %v913, %v904
  %v915 = vsel %vm908, %v911, %v914
  %v916 = vsel %vm905, nan, %v915
  %vm917 = vcmask 408576
  %918 = vst.msk [vmem:[%s2] sm:$0xff] %vm917, %v188
  %919 = vst.msk [vmem:[%s2 + $0x8] sm:$0xff] %vm917, %v292
  %920 = vst.msk [vmem:[%s2 + $0x10] sm:$0xff] %vm917, %v396
  %921 = vst.msk [vmem:[%s2 + $0x18] sm:$0xff] %vm917, %v500
  %922 = vst.msk [vmem:[%s2 + $0x20] sm:$0xff] %vm917, %v604
  %923 = vst.msk [vmem:[%s2 + $0x28] sm:$0xff] %vm917, %v708
  %924 = vst.msk [vmem:[%s2 + $0x30] sm:$0xff] %vm917, %v812
  %925 = vst.msk [vmem:[%s2 + $0x38] sm:$0xff] %vm917, %v916
  // Predicated region
  $region10: #{tpu_custom_call.1} parent=0 // pred_check
    _
  $region11: #{tpu_custom_call.1} parent=0 // pred_check_branch
    %927 = sbr.rel (0) target = $region13
  $region12: #{tpu_custom_call.1} parent=0 // pred_region
    _
  $region13: #{tpu_custom_call.1} parent=0 // pred_fallthru
    _
  // Predicated region
  $region14: #{tpu_custom_call.1} parent=0 // pred_check
    _
  $region15: #{tpu_custom_call.1} parent=0 // pred_check_branch
    %929 = sbr.rel (0) target = $region17
  $region16: #{tpu_custom_call.1} parent=0 // pred_region
    _
  $region17: #{tpu_custom_call.1} parent=0 // pred_fallthru
    _

</llo_original>
